<compile_context>
chip_gen: v7x
topology: tpu7x:2x2x1
jax: 0.10.0
libtpu: 0.0.40
codegen_flags: <defaults>
</compile_context>

<pallas_src>
import jax
import jax.numpy as jnp
from jax.experimental import pallas as pl
from jax.experimental.pallas import tpu as pltpu


def actor_kernel(x_ref, w1_ref, b1_ref, w2_ref, b2_ref, w3_ref, b3_ref, o_ref):
    bf16 = jnp.bfloat16
    # fc1 + relu  (bf16 MXU operands, f32 accumulate, f32 epilogue)
    h1 = jnp.dot(x_ref[...].astype(bf16), w1_ref[...].astype(bf16),
                 preferred_element_type=jnp.float32)
    h1 = jnp.maximum(h1 + b1_ref[...], 0.0)
    # fc2 + relu
    h2 = jnp.dot(h1.astype(bf16), w2_ref[...].astype(bf16),
                 preferred_element_type=jnp.float32)
    h2 = jnp.maximum(h2 + b2_ref[...], 0.0)
    # continuous_output + tanh (output width is lane-padded to a multiple of 128)
    out = jnp.dot(h2.astype(bf16), w3_ref[...].astype(bf16),
                  preferred_element_type=jnp.float32) + b3_ref[...]
    o_ref[...] = jnp.tanh(out).astype(o_ref.dtype)


def actor_forward(state, w1, b1, w2, b2, w3, b3, *, bm=None):
    B, input_dims = state.shape
    fc1_dims = w1.shape[1]
    fc2_dims = w2.shape[1]
    n_actions = w3.shape[1]

    # --- lane-dense last layer: pad output width to a multiple of 128 ---
    n_pad = pl.cdiv(n_actions, 128) * 128
    if n_pad != n_actions:
        w3p = jnp.pad(w3, ((0, 0), (0, n_pad - n_actions)))
        b3p = jnp.pad(b3, ((0, 0), (0, n_pad - n_actions)))
    else:
        w3p, b3p = w3, b3

    # --- batch tiling ---
    # Small batch: single full-extent tile (no padding needed; a block equal to
    # the full array dim satisfies the (8,128) constraint).  Large batch:
    # 512-row tiles (sublane-aligned), pad the batch up to a tile multiple.
    if bm is None:
        bm = B if B <= 1024 else 512
    if bm >= B:
        bm, Bp, state_p = B, B, state
    else:
        bm = max(8, ((bm + 7) // 8) * 8)
        Bp = pl.cdiv(B, bm) * bm
        state_p = jnp.pad(state, ((0, Bp - B), (0, 0))) if Bp != B else state

    grid = (Bp // bm,)
    # Weights / biases: full-array resident blocks, constant index_map.
    full = lambda shape: pl.BlockSpec(shape, lambda i: (0, 0))

    cost = pl.CostEstimate(
        flops=2 * Bp * (input_dims * fc1_dims + fc1_dims * fc2_dims
                        + fc2_dims * n_pad),
        transcendentals=Bp * n_pad,  # tanh
        bytes_accessed=4 * (state_p.size + w1.size + b1.size + w2.size
                            + b2.size + w3p.size + b3p.size + Bp * n_pad),
    )

    out = pl.pallas_call(
        actor_kernel,
        out_shape=jax.ShapeDtypeStruct((Bp, n_pad), state.dtype),
        grid_spec=pltpu.PrefetchScalarGridSpec(
            num_scalar_prefetch=0,
            grid=grid,
            in_specs=[
                pl.BlockSpec((bm, input_dims), lambda i: (i, 0)),
                full((input_dims, fc1_dims)),
                full((1, fc1_dims)),
                full((fc1_dims, fc2_dims)),
                full((1, fc2_dims)),
                full((fc2_dims, n_pad)),
                full((1, n_pad)),
            ],
            out_specs=pl.BlockSpec((bm, n_pad), lambda i: (i, 0)),
        ),
        compiler_params=pltpu.CompilerParams(
            dimension_semantics=("parallel",),
        ),
        cost_estimate=cost,
    )(state_p, w1, b1, w2, b2, w3p, b3p)

    if Bp != B or n_pad != n_actions:
        out = out[:B, :n_actions]
    return out


def init_linear(key, fan_in, fan_out):
    # Deterministic init mimicking PyTorch nn.Linear default:
    # U(-1/sqrt(fan_in), 1/sqrt(fan_in)); weights stored as (in, out).
    kw, kb = jax.random.split(key)
    bound = 1.0 / jnp.sqrt(jnp.float32(fan_in))
    w = jax.random.uniform(kw, (fan_in, fan_out), jnp.float32, -bound, bound)
    b = jax.random.uniform(kb, (1, fan_out), jnp.float32, -bound, bound)
    return w, b


if __name__ == "__main__":
    # Small shapes consistent with the module: fc2_dims must be 64 because
    # continuous_output is Linear(64, n_actions).
    B = 16
    input_dims = 32
    fc1_dims = 64
    fc2_dims = 64
    n_actions = 4

    key = jax.random.PRNGKey(0)
    k_state, k1, k2, k3 = jax.random.split(key, 4)

    state = jax.random.normal(k_state, (B, input_dims), jnp.float32)
    w1, b1 = init_linear(k1, input_dims, fc1_dims)
    w2, b2 = init_linear(k2, fc1_dims, fc2_dims)
    w3, b3 = init_linear(k3, fc2_dims, n_actions)
    # TODO(synk): fc3 / fc4 from __init__ are unused in forward(), so not instantiated.

    out = actor_forward(state, w1, b1, w2, b2, w3, b3)
    out = jax.block_until_ready(out)
    assert out.shape == (B, n_actions)

    # Reference 1: matches kernel numerics (bf16 MXU operands, f32 accumulate).
    bf = jnp.bfloat16
    h1 = jnp.maximum(jnp.dot(state.astype(bf), w1.astype(bf),
                             preferred_element_type=jnp.float32) + b1, 0.0)
    h2 = jnp.maximum(jnp.dot(h1.astype(bf), w2.astype(bf),
                             preferred_element_type=jnp.float32) + b2, 0.0)
    ref_bf16 = jnp.tanh(jnp.dot(h2.astype(bf), w3.astype(bf),
                                preferred_element_type=jnp.float32) + b3)
    assert jnp.allclose(out, ref_bf16, atol=1e-4, rtol=1e-4)

    # Reference 2: pure-f32 module semantics (loose tolerance due to bf16 MXU inputs).
    h1f = jnp.maximum(state @ w1 + b1, 0.0)
    h2f = jnp.maximum(h1f @ w2 + b2, 0.0)
    ref_f32 = jnp.tanh(h2f @ w3 + b3)
    assert jnp.allclose(out, ref_f32, atol=3e-2, rtol=3e-2)

    print("KERNEL_OK")
</pallas_src>

<mosaic_0001>
module attributes {stable_mosaic.version = 11 : i64} {
  func.func @actor_kernel(%arg0: i32, %arg1: memref<16x32xf32, #tpu.memory_space<vmem>>, %arg2: memref<32x64xf32, #tpu.memory_space<vmem>>, %arg3: memref<1x64xf32, #tpu.memory_space<vmem>>, %arg4: memref<64x64xf32, #tpu.memory_space<vmem>>, %arg5: memref<1x64xf32, #tpu.memory_space<vmem>>, %arg6: memref<64x128xf32, #tpu.memory_space<vmem>>, %arg7: memref<1x128xf32, #tpu.memory_space<vmem>>, %arg8: memref<16x128xf32, #tpu.memory_space<vmem>>) attributes {dimension_semantics = [#tpu.dimension_semantics<parallel>], iteration_bounds = array<i64: 1>, scalar_prefetch = 0 : i64, scratch_operands = 0 : i64, tpu.core_type = #tpu.core_type<tc>, window_params = [{transform_indices = @transform_0, window_bounds = array<i64: 16, 32>}, {pipeline_mode = #tpu.pipeline_mode<synchronous>, transform_indices = @transform_1, window_bounds = array<i64: 32, 64>}, {pipeline_mode = #tpu.pipeline_mode<synchronous>, transform_indices = @transform_2, window_bounds = array<i64: 1, 64>}, {pipeline_mode = #tpu.pipeline_mode<synchronous>, transform_indices = @transform_3, window_bounds = array<i64: 64, 64>}, {pipeline_mode = #tpu.pipeline_mode<synchronous>, transform_indices = @transform_4, window_bounds = array<i64: 1, 64>}, {pipeline_mode = #tpu.pipeline_mode<synchronous>, transform_indices = @transform_5, window_bounds = array<i64: 64, 128>}, {pipeline_mode = #tpu.pipeline_mode<synchronous>, transform_indices = @transform_6, window_bounds = array<i64: 1, 128>}, {transform_indices = @transform_7, window_bounds = array<i64: 16, 128>}]} {
    %c0 = arith.constant 0 : index
    %c0_0 = arith.constant 0 : index
    %0 = vector.load %arg1[%c0, %c0_0] : memref<16x32xf32, #tpu.memory_space<vmem>>, vector<16x32xf32>
    %1 = arith.truncf %0 : vector<16x32xf32> to vector<16x32xbf16>
    %c0_1 = arith.constant 0 : index
    %c0_2 = arith.constant 0 : index
    %2 = vector.load %arg2[%c0_1, %c0_2] : memref<32x64xf32, #tpu.memory_space<vmem>>, vector<32x64xf32>
    %3 = arith.truncf %2 : vector<32x64xf32> to vector<32x64xbf16>
    %cst = arith.constant dense<0.000000e+00> : vector<16x64xf32>
    %4 = tpu.matmul %1, %3, %cst {dimension_numbers = #tpu.dot_dimension_numbers<[1], [0], [0], [1], [0, 0, 1, 1], [], []>} : vector<16x32xbf16>, vector<32x64xbf16>, vector<16x64xf32> -> vector<16x64xf32>
    %c0_3 = arith.constant 0 : index
    %c0_4 = arith.constant 0 : index
    %5 = vector.load %arg3[%c0_3, %c0_4] : memref<1x64xf32, #tpu.memory_space<vmem>>, vector<1x64xf32>
    %6 = vector.broadcast %5 : vector<1x64xf32> to vector<16x64xf32>
    %7 = arith.addf %4, %6 : vector<16x64xf32>
    %cst_5 = arith.constant 0.000000e+00 : f32
    %8 = vector.broadcast %cst_5 : f32 to vector<16x64xf32>
    %9 = arith.maximumf %7, %8 : vector<16x64xf32>
    %10 = arith.truncf %9 : vector<16x64xf32> to vector<16x64xbf16>
    %c0_6 = arith.constant 0 : index
    %c0_7 = arith.constant 0 : index
    %11 = vector.load %arg4[%c0_6, %c0_7] : memref<64x64xf32, #tpu.memory_space<vmem>>, vector<64x64xf32>
    %12 = arith.truncf %11 : vector<64x64xf32> to vector<64x64xbf16>
    %cst_8 = arith.constant dense<0.000000e+00> : vector<16x64xf32>
    %13 = tpu.matmul %10, %12, %cst_8 {dimension_numbers = #tpu.dot_dimension_numbers<[1], [0], [0], [1], [0, 0, 1, 1], [], []>} : vector<16x64xbf16>, vector<64x64xbf16>, vector<16x64xf32> -> vector<16x64xf32>
    %c0_9 = arith.constant 0 : index
    %c0_10 = arith.constant 0 : index
    %14 = vector.load %arg5[%c0_9, %c0_10] : memref<1x64xf32, #tpu.memory_space<vmem>>, vector<1x64xf32>
    %15 = vector.broadcast %14 : vector<1x64xf32> to vector<16x64xf32>
    %16 = arith.addf %13, %15 : vector<16x64xf32>
    %cst_11 = arith.constant 0.000000e+00 : f32
    %17 = vector.broadcast %cst_11 : f32 to vector<16x64xf32>
    %18 = arith.maximumf %16, %17 : vector<16x64xf32>
    %19 = arith.truncf %18 : vector<16x64xf32> to vector<16x64xbf16>
    %c0_12 = arith.constant 0 : index
    %c0_13 = arith.constant 0 : index
    %20 = vector.load %arg6[%c0_12, %c0_13] : memref<64x128xf32, #tpu.memory_space<vmem>>, vector<64x128xf32>
    %21 = arith.truncf %20 : vector<64x128xf32> to vector<64x128xbf16>
    %cst_14 = arith.constant dense<0.000000e+00> : vector<16x128xf32>
    %22 = tpu.matmul %19, %21, %cst_14 {dimension_numbers = #tpu.dot_dimension_numbers<[1], [0], [0], [1], [0, 0, 1, 1], [], []>} : vector<16x64xbf16>, vector<64x128xbf16>, vector<16x128xf32> -> vector<16x128xf32>
    %c0_15 = arith.constant 0 : index
    %c0_16 = arith.constant 0 : index
    %23 = vector.load %arg7[%c0_15, %c0_16] : memref<1x128xf32, #tpu.memory_space<vmem>>, vector<1x128xf32>
    %24 = vector.broadcast %23 : vector<1x128xf32> to vector<16x128xf32>
    %25 = arith.addf %22, %24 : vector<16x128xf32>
    %26 = math.tanh %25 : vector<16x128xf32>
    %c0_17 = arith.constant 0 : index
    %c0_18 = arith.constant 0 : index
    %27 = vector.load %arg8[%c0_17, %c0_18] : memref<16x128xf32, #tpu.memory_space<vmem>>, vector<16x128xf32>
    tpu.vector_store %arg8[%c0_17, %c0_18], %26 {strides = array<i32>} : memref<16x128xf32, #tpu.memory_space<vmem>>, vector<16x128xf32>,
    return
  }
  func.func @transform_0(%arg0: i32) -> (i32, i32) {
    %c0_i32 = arith.constant 0 : i32
    %c0_i32_0 = arith.constant 0 : i32
    return %arg0, %c0_i32 : i32, i32
  }
  func.func @transform_1(%arg0: i32) -> (i32, i32) {
    %c0_i32 = arith.constant 0 : i32
    %c0_i32_0 = arith.constant 0 : i32
    %c0_i32_1 = arith.constant 0 : i32
    return %c0_i32, %c0_i32_0 : i32, i32
  }
  func.func @transform_2(%arg0: i32) -> (i32, i32) {
    %c0_i32 = arith.constant 0 : i32
    %c0_i32_0 = arith.constant 0 : i32
    %c0_i32_1 = arith.constant 0 : i32
    return %c0_i32, %c0_i32_0 : i32, i32
  }
  func.func @transform_3(%arg0: i32) -> (i32, i32) {
    %c0_i32 = arith.constant 0 : i32
    %c0_i32_0 = arith.constant 0 : i32
    %c0_i32_1 = arith.constant 0 : i32
    return %c0_i32, %c0_i32_0 : i32, i32
  }
  func.func @transform_4(%arg0: i32) -> (i32, i32) {
    %c0_i32 = arith.constant 0 : i32
    %c0_i32_0 = arith.constant 0 : i32
    %c0_i32_1 = arith.constant 0 : i32
    return %c0_i32, %c0_i32_0 : i32, i32
  }
  func.func @transform_5(%arg0: i32) -> (i32, i32) {
    %c0_i32 = arith.constant 0 : i32
    %c0_i32_0 = arith.constant 0 : i32
    %c0_i32_1 = arith.constant 0 : i32
    return %c0_i32, %c0_i32_0 : i32, i32
  }
  func.func @transform_6(%arg0: i32) -> (i32, i32) {
    %c0_i32 = arith.constant 0 : i32
    %c0_i32_0 = arith.constant 0 : i32
    %c0_i32_1 = arith.constant 0 : i32
    return %c0_i32, %c0_i32_0 : i32, i32
  }
  func.func @transform_7(%arg0: i32) -> (i32, i32) {
    %c0_i32 = arith.constant 0 : i32
    %c0_i32_0 = arith.constant 0 : i32
    return %arg0, %c0_i32 : i32, i32
  }
}

</mosaic_0001>

<llo_original>
// kernel: tpu_custom_call.1
$region0: #{tpu_custom_call.1}
  #allocation0 [shape = 'u32[]', space=smem, size = 0x4, offset = 0x4, fixed_abs, tag = 'smem constant byte address 0x4 - core index']
  #allocation1 [shape = 'u32[144,128]{1,0:T(1,128)}', space=vmem, size = 0x12000, scoped, tag = 'internal scratch']
  %s0 = inlined_call_operand.hbm [shape: f32[16,32], index: 0, kind: input, shape index: {}]
  %s1 = inlined_call_operand.hbm [shape: f32[32,64], index: 1, kind: input, shape index: {}]
  %s2 = inlined_call_operand.vmem [shape: f32[1,64], index: 2, kind: input, shape index: {}]
  %s3 = inlined_call_operand.hbm [shape: f32[64,64], index: 3, kind: input, shape index: {}]
  %s4 = inlined_call_operand.vmem [shape: f32[1,64], index: 4, kind: input, shape index: {}]
  %s5 = inlined_call_operand.hbm [shape: f32[64,128], index: 5, kind: input, shape index: {}]
  %s6 = inlined_call_operand.vmem [shape: f32[1,128], index: 6, kind: input, shape index: {}]
  %s7 = inlined_call_operand.hbm [shape: f32[16,128], index: 7, kind: output, shape index: {}]
  %s8 = sld [smem:[#allocation0]]
  $region54: #{tpu_custom_call.1} parent=0
    _
  %s10 = ssub.s32 1, %s8
  %s11 = scalar_select 0, %s10, %s8
  $region1: #{tpu_custom_call.1} parent=0
    #allocation2 [shape = 'u8[8192]{0}', space=vmem, size = 0x2000, scoped, tag = 'input window, operand 0, single buffered']
    #allocation3 [shape = 's32[1]{0}', space=sflag, size = 0x4, scoped, tag = 'scoped memory for tpu_custom_call.1']
    #allocation4 [shape = 's32[1]{0}', space=sflag, size = 0x4, scoped, tag = 'scoped memory for tpu_custom_call.1']
    #allocation5 [shape = 'u8[16384]{0}', space=vmem, size = 0x4000, scoped, tag = 'input window, operand 1, single buffered']
    #allocation6 [shape = 's32[1]{0}', space=sflag, size = 0x4, scoped, tag = 'scoped memory for tpu_custom_call.1']
    #allocation7 [shape = 'u8[32768]{0}', space=vmem, size = 0x8000, scoped, tag = 'input window, operand 3, single buffered']
    #allocation8 [shape = 'u8[32768]{0}', space=vmem, size = 0x8000, scoped, tag = 'input window, operand 5, single buffered']
    #allocation9 [shape = 's32[1]{0}', space=sflag, size = 0x4, scoped, tag = 'scoped memory for tpu_custom_call.1']
    #allocation10 [shape = 'u8[8192]{0}', space=vmem, size = 0x2000, scoped, tag = 'output window, operand 0, single buffered']
    %12 = vsyncpa [#allocation3], 0
    %13 = vsyncpa [#allocation6], 0
    %14 = vsyncpa [#allocation9], 0
    %15 = vsyncpa [#allocation4], 0
    // Predicated region
    $region2: #{tpu_custom_call.1} parent=1 // pred_check
      _
    $region3: #{tpu_custom_call.1} parent=1 // pred_check_branch
      %17 = sbr.rel (0) target = $region5
    $region4: #{tpu_custom_call.1} parent=1 // pred_region
      %s19 = ssub.s32 256, 256
      %20 = vsyncadd [#allocation3], %s19
      %s21 = sshll.u32 [#allocation2], 4
      %s22 = int_to_ptr.vmem [resolvable:$true] %s21
      %27 = dma.hbm_to_vmem [thread:$0]  %s0, 256, %s22, [#allocation3], 128, 128, 8
    $region5: #{tpu_custom_call.1} parent=1 // pred_fallthru
      _
    // Predicated region
    $region6: #{tpu_custom_call.1} parent=1 // pred_check
      _
    $region7: #{tpu_custom_call.1} parent=1 // pred_check_branch
      %29 = sbr.rel (0) target = $region9
    $region8: #{tpu_custom_call.1} parent=1 // pred_region
      %s31 = ssub.s32 512, 512
      %32 = vsyncadd [#allocation6], %s31
      %s33 = sshll.u32 [#allocation5], 4
      %s34 = int_to_ptr.vmem [resolvable:$true] %s33
      %39 = dma.hbm_to_vmem [thread:$0]  %s1, 512, %s34, [#allocation6], 128, 128, 8
    $region9: #{tpu_custom_call.1} parent=1 // pred_fallthru
      _
    // Predicated region
    $region10: #{tpu_custom_call.1} parent=1 // pred_check
      _
    $region11: #{tpu_custom_call.1} parent=1 // pred_check_branch
      %41 = sbr.rel (0) target = $region13
    $region12: #{tpu_custom_call.1} parent=1 // pred_region
      _
    $region13: #{tpu_custom_call.1} parent=1 // pred_fallthru
      _
    // Predicated region
    $region14: #{tpu_custom_call.1} parent=1 // pred_check
      _
    $region15: #{tpu_custom_call.1} parent=1 // pred_check_branch
      %43 = sbr.rel (0) target = $region17
    $region16: #{tpu_custom_call.1} parent=1 // pred_region
      %s45 = ssub.s32 1024, 1024
      %46 = vsyncadd [#allocation6], %s45
      %s47 = sshll.u32 [#allocation7], 4
      %s48 = int_to_ptr.vmem [resolvable:$true] %s47
      %53 = dma.hbm_to_vmem [thread:$0]  %s3, 1024, %s48, [#allocation6], 128, 128, 8
    $region17: #{tpu_custom_call.1} parent=1 // pred_fallthru
      _
    // Predicated region
    $region18: #{tpu_custom_call.1} parent=1 // pred_check
      _
    $region19: #{tpu_custom_call.1} parent=1 // pred_check_branch
      %55 = sbr.rel (0) target = $region21
    $region20: #{tpu_custom_call.1} parent=1 // pred_region
      _
    $region21: #{tpu_custom_call.1} parent=1 // pred_fallthru
      _
    // Predicated region
    $region22: #{tpu_custom_call.1} parent=1 // pred_check
      _
    $region23: #{tpu_custom_call.1} parent=1 // pred_check_branch
      %57 = sbr.rel (0) target = $region25
    $region24: #{tpu_custom_call.1} parent=1 // pred_region
      %s59 = ssub.s32 1024, 1024
      %60 = vsyncadd [#allocation9], %s59
      %s61 = sshll.u32 [#allocation8], 4
      %s62 = int_to_ptr.vmem [resolvable:$true] %s61
      %67 = dma.hbm_to_vmem [thread:$0]  %s5, 1024, %s62, [#allocation9], 128, 128, 8
    $region25: #{tpu_custom_call.1} parent=1 // pred_fallthru
      _
    // Predicated region
    $region26: #{tpu_custom_call.1} parent=1 // pred_check
      _
    $region27: #{tpu_custom_call.1} parent=1 // pred_check_branch
      %69 = sbr.rel (0) target = $region29
    $region28: #{tpu_custom_call.1} parent=1 // pred_region
      _
    $region29: #{tpu_custom_call.1} parent=1 // pred_fallthru
      _
    // Predicated region
    $region30: #{tpu_custom_call.1} parent=1 // pred_check
      _
    $region31: #{tpu_custom_call.1} parent=1 // pred_check_branch
      %71 = sbr.rel (0) target = $region33
    $region32: #{tpu_custom_call.1} parent=1 // pred_region
      %72 = dma.done [#allocation3], 256
    $region33: #{tpu_custom_call.1} parent=1 // pred_fallthru
      _
    // Predicated region
    $region34: #{tpu_custom_call.1} parent=1 // pred_check
      _
    $region35: #{tpu_custom_call.1} parent=1 // pred_check_branch
      %74 = sbr.rel (0) target = $region37
    $region36: #{tpu_custom_call.1} parent=1 // pred_region
      %75 = dma.done [#allocation6], 512
    $region37: #{tpu_custom_call.1} parent=1 // pred_fallthru
      _
    // Predicated region
    $region38: #{tpu_custom_call.1} parent=1 // pred_check
      _
    $region39: #{tpu_custom_call.1} parent=1 // pred_check_branch
      %77 = sbr.rel (0) target = $region41
    $region40: #{tpu_custom_call.1} parent=1 // pred_region
      %78 = dma.done [#allocation6], 1024
    $region41: #{tpu_custom_call.1} parent=1 // pred_fallthru
      _
    // Predicated region
    $region42: #{tpu_custom_call.1} parent=1 // pred_check
      _
    $region43: #{tpu_custom_call.1} parent=1 // pred_check_branch
      %80 = sbr.rel (0) target = $region45
    $region44: #{tpu_custom_call.1} parent=1 // pred_region
      %81 = dma.done [#allocation9], 1024
    $region45: #{tpu_custom_call.1} parent=1 // pred_fallthru
      _
    %v83 = vld [vmem:[#allocation2] sm:$0xff]
    %v84 = vld [vmem:[#allocation2 + $0x8] sm:$0xff]
    %v85 = vpack.c.bf16 %v84, %v83
    %v86 = vld [vmem:[#allocation5] sm:$0xff]
    %v87 = vld [vmem:[#allocation5 + $0x8] sm:$0xff]
    %v88 = vld [vmem:[#allocation5 + $0x10] sm:$0xff]
    %v89 = vld [vmem:[#allocation5 + $0x18] sm:$0xff]
    %v90 = vpack.c.bf16 %v87, %v86
    %v91 = vpack.c.bf16 %v89, %v88
    %v92 = vld [vmem:[%s2] sm:$0x1]
    %v94 = vlaneseq
    %v95 = vshrl.u32 %v94, 7
    %v96 = vsub.s32 0, %v95
    %v97 = vrot.slane %v92, %v96
    %vm99 = vcmask 261120
    %v101 = vsel %vm99, %v85, 0
    %103 = vmatprep.subr.bf16.mxu0 0
    %104 = vmatpush1.bf16.msra.mxu0 %v90
    %105 = vmatprep.subr.bf16.mxu0 0
    %106 = vmatpush1.bf16.msra.mxu0 %v91
    %107 = vmatprep.subr.bf16.mxu0 0
    %108 = vmatpush1.bf16.msra.mxu0 0
    %109 = vmatprep.subr.bf16.mxu0 0
    %110 = vmatpush1.bf16.msra.mxu0 0
    %111 = vmatprep.subr.bf16.mxu0 0
    %112 = vmatpush1.bf16.msra.mxu0 0
    %113 = vmatprep.subr.bf16.mxu0 0
    %114 = vmatpush1.bf16.msra.mxu0 0
    %115 = vmatprep.subr.bf16.mxu0 0
    %116 = vmatpush1.bf16.msra.mxu0 0
    %117 = vmatprep.subr.bf16.mxu0 0
    %118 = vmatpush1.bf16.msra.mxu0 0
    %119 = vmatprep.subr.bf16.mxu0 0
    %120 = vmatpush1.bf16.msra.mxu0 0
    %121 = vmatprep.subr.bf16.mxu0 0
    %122 = vmatpush1.bf16.msra.mxu0 0
    %123 = vmatprep.subr.bf16.mxu0 0
    %124 = vmatpush1.bf16.msra.mxu0 0
    %125 = vmatprep.subr.bf16.mxu0 0
    %126 = vmatpush1.bf16.msra.mxu0 0
    %127 = vmatprep.subr.bf16.mxu0 0
    %128 = vmatpush1.bf16.msra.mxu0 0
    %129 = vmatprep.subr.bf16.mxu0 0
    %130 = vmatpush1.bf16.msra.mxu0 0
    %131 = vmatprep.subr.bf16.mxu0 0
    %132 = vmatpush1.bf16.msra.mxu0 0
    %133 = vmatprep.subr.bf16.mxu0 0
    %134 = vmatpush1.bf16.msra.mxu0 0
    %135 = vmatprep.mubr.bf16.mxu0 0
    %136 = vmatmul.mubr.bf16.gmra.mrb[0].mxu0 %v101
    %v137 = vpop.f32.mrb[0].mxu0
    %v138 = vadd.f32 %v97, %v137
    %v139 = vpop.f32.mrb[0].mxu0
    %v140 = vpop.f32.mrb[0].mxu0
    %v141 = vadd.f32 %v97, %v140
    %v142 = vpop.f32.mrb[0].mxu0
    %143 = vdwg.mxu0
    %v144 = vmax.f32 %v138, 0.0
    %v145 = vmax.f32 %v141, 0.0
    %v146 = vpack.c.bf16 %v145, %v144
    %v147 = vld [vmem:[#allocation7] sm:$0xff]
    %v148 = vld [vmem:[#allocation7 + $0x8] sm:$0xff]
    %v149 = vld [vmem:[#allocation7 + $0x10] sm:$0xff]
    %v150 = vld [vmem:[#allocation7 + $0x18] sm:$0xff]
    %v151 = vld [vmem:[#allocation7 + $0x20] sm:$0xff]
    %v152 = vld [vmem:[#allocation7 + $0x28] sm:$0xff]
    %v153 = vld [vmem:[#allocation7 + $0x30] sm:$0xff]
    %v154 = vld [vmem:[#allocation7 + $0x38] sm:$0xff]
    %v155 = vpack.c.bf16 %v148, %v147
    %v156 = vpack.c.bf16 %v150, %v149
    %v157 = vpack.c.bf16 %v152, %v151
    %v158 = vpack.c.bf16 %v154, %v153
    %v159 = vld [vmem:[%s4] sm:$0x1]
    %v161 = vlaneseq
    %v162 = vshrl.u32 %v161, 7
    %v163 = vsub.s32 0, %v162
    %v164 = vrot.slane %v159, %v163
    %vm166 = vcmask 523264
    %v168 = vsel %vm166, %v146, 0
    %170 = vmatprep.subr.bf16.mxu0 0
    %171 = vmatpush1.bf16.msra.mxu0 %v155
    %172 = vmatprep.subr.bf16.mxu0 0
    %173 = vmatpush1.bf16.msra.mxu0 %v156
    %174 = vmatprep.subr.bf16.mxu0 0
    %175 = vmatpush1.bf16.msra.mxu0 %v157
    %176 = vmatprep.subr.bf16.mxu0 0
    %177 = vmatpush1.bf16.msra.mxu0 %v158
    %178 = vmatprep.subr.bf16.mxu0 0
    %179 = vmatpush1.bf16.msra.mxu0 0
    %180 = vmatprep.subr.bf16.mxu0 0
    %181 = vmatpush1.bf16.msra.mxu0 0
    %182 = vmatprep.subr.bf16.mxu0 0
    %183 = vmatpush1.bf16.msra.mxu0 0
    %184 = vmatprep.subr.bf16.mxu0 0
    %185 = vmatpush1.bf16.msra.mxu0 0
    %186 = vmatprep.subr.bf16.mxu0 0
    %187 = vmatpush1.bf16.msra.mxu0 0
    %188 = vmatprep.subr.bf16.mxu0 0
    %189 = vmatpush1.bf16.msra.mxu0 0
    %190 = vmatprep.subr.bf16.mxu0 0
    %191 = vmatpush1.bf16.msra.mxu0 0
    %192 = vmatprep.subr.bf16.mxu0 0
    %193 = vmatpush1.bf16.msra.mxu0 0
    %194 = vmatprep.subr.bf16.mxu0 0
    %195 = vmatpush1.bf16.msra.mxu0 0
    %196 = vmatprep.subr.bf16.mxu0 0
    %197 = vmatpush1.bf16.msra.mxu0 0
    %198 = vmatprep.subr.bf16.mxu0 0
    %199 = vmatpush1.bf16.msra.mxu0 0
    %200 = vmatprep.subr.bf16.mxu0 0
    %201 = vmatpush1.bf16.msra.mxu0 0
    %202 = vmatprep.mubr.bf16.mxu0 0
    %203 = vmatmul.mubr.bf16.gmra.mrb[0].mxu0 %v168
    %v204 = vpop.f32.mrb[0].mxu0
    %v205 = vadd.f32 %v164, %v204
    %v206 = vpop.f32.mrb[0].mxu0
    %v207 = vpop.f32.mrb[0].mxu0
    %v208 = vadd.f32 %v164, %v207
    %v209 = vpop.f32.mrb[0].mxu0
    %210 = vdwg.mxu0
    %v211 = vmax.f32 %v205, 0.0
    %v212 = vmax.f32 %v208, 0.0
    %v213 = vpack.c.bf16 %v212, %v211
    %v214 = vld [vmem:[#allocation8] sm:$0xff]
    %v215 = vld [vmem:[#allocation8 + $0x8] sm:$0xff]
    %v216 = vld [vmem:[#allocation8 + $0x10] sm:$0xff]
    %v217 = vld [vmem:[#allocation8 + $0x18] sm:$0xff]
    %v218 = vld [vmem:[#allocation8 + $0x20] sm:$0xff]
    %v219 = vld [vmem:[#allocation8 + $0x28] sm:$0xff]
    %v220 = vld [vmem:[#allocation8 + $0x30] sm:$0xff]
    %v221 = vld [vmem:[#allocation8 + $0x38] sm:$0xff]
    %v222 = vpack.c.bf16 %v215, %v214
    %v223 = vpack.c.bf16 %v217, %v216
    %v224 = vpack.c.bf16 %v219, %v218
    %v225 = vpack.c.bf16 %v221, %v220
    %v226 = vld [vmem:[%s6] sm:$0x1]
    %v228 = vlaneseq
    %v229 = vshrl.u32 %v228, 7
    %v230 = vsub.s32 0, %v229
    %v231 = vrot.slane %v226, %v230
    %v234 = vsel %vm166, %v213, 0
    %236 = vmatprep.subr.bf16.mxu0 0
    %237 = vmatpush1.bf16.msra.mxu0 %v222
    %238 = vmatprep.subr.bf16.mxu0 0
    %239 = vmatpush1.bf16.msra.mxu0 %v223
    %240 = vmatprep.subr.bf16.mxu0 0
    %241 = vmatpush1.bf16.msra.mxu0 %v224
    %242 = vmatprep.subr.bf16.mxu0 0
    %243 = vmatpush1.bf16.msra.mxu0 %v225
    %244 = vmatprep.subr.bf16.mxu0 0
    %245 = vmatpush1.bf16.msra.mxu0 0
    %246 = vmatprep.subr.bf16.mxu0 0
    %247 = vmatpush1.bf16.msra.mxu0 0
    %248 = vmatprep.subr.bf16.mxu0 0
    %249 = vmatpush1.bf16.msra.mxu0 0
    %250 = vmatprep.subr.bf16.mxu0 0
    %251 = vmatpush1.bf16.msra.mxu0 0
    %252 = vmatprep.subr.bf16.mxu0 0
    %253 = vmatpush1.bf16.msra.mxu0 0
    %254 = vmatprep.subr.bf16.mxu0 0
    %255 = vmatpush1.bf16.msra.mxu0 0
    %256 = vmatprep.subr.bf16.mxu0 0
    %257 = vmatpush1.bf16.msra.mxu0 0
    %258 = vmatprep.subr.bf16.mxu0 0
    %259 = vmatpush1.bf16.msra.mxu0 0
    %260 = vmatprep.subr.bf16.mxu0 0
    %261 = vmatpush1.bf16.msra.mxu0 0
    %262 = vmatprep.subr.bf16.mxu0 0
    %263 = vmatpush1.bf16.msra.mxu0 0
    %264 = vmatprep.subr.bf16.mxu0 0
    %265 = vmatpush1.bf16.msra.mxu0 0
    %266 = vmatprep.subr.bf16.mxu0 0
    %267 = vmatpush1.bf16.msra.mxu0 0
    %268 = vmatprep.mubr.bf16.mxu0 0
    %269 = vmatmul.mubr.bf16.gmra.mrb[0].mxu0 %v234
    %v270 = vpop.f32.mrb[0].mxu0
    %v271 = vadd.f32 %v231, %v270
    %v272 = vpop.f32.mrb[0].mxu0
    %v273 = vpop.f32.mrb[0].mxu0
    %v274 = vadd.f32 %v231, %v273
    %v275 = vpop.f32.mrb[0].mxu0
    %276 = vdwg.mxu0
    %v277 = vtanh.pop %v271
    %v278 = vtanh.pop %v274
    %279 = vst [vmem:[#allocation10] sm:$0xff] %v277
    %280 = vst [vmem:[#allocation10 + $0x8] sm:$0xff] %v278
    // Predicated region
    $region46: #{tpu_custom_call.1} parent=1 // pred_check
      _
    $region47: #{tpu_custom_call.1} parent=1 // pred_check_branch
      %282 = sbr.rel (0) target = $region49
    $region48: #{tpu_custom_call.1} parent=1 // pred_region
      %s284 = ssub.s32 256, 256
      %285 = vsyncadd [#allocation4], %s284
      %s286 = sshll.u32 [#allocation10], 4
      %s287 = int_to_ptr.vmem [resolvable:$true] %s286
      %292 = dma.vmem_to_hbm [thread:$0]  %s287, 256, %s7, [#allocation4], 128, 128, 8
    $region49: #{tpu_custom_call.1} parent=1 // pred_fallthru
      _
    // Predicated region
    $region50: #{tpu_custom_call.1} parent=1 // pred_check
      _
    $region51: #{tpu_custom_call.1} parent=1 // pred_check_branch
      %294 = sbr.rel (0) target = $region53
    $region52: #{tpu_custom_call.1} parent=1 // pred_region
      %295 = dma.done [#allocation4], 256
    $region53: #{tpu_custom_call.1} parent=1 // pred_fallthru
      _
    %296 = vsyncpa [#allocation3], 1
    %297 = vsyncpa [#allocation6], 1
    %298 = vsyncpa [#allocation9], 1
    %299 = vsyncpa [#allocation4], 1

</llo_original>
